<compile_context>
chip_gen: v7x
topology: tpu7x:2x2x1
jax: 0.10.0
libtpu: 0.0.40
codegen_flags: <defaults>
</compile_context>

<pallas_src>
import functools

import jax
import jax.numpy as jnp
from jax.experimental import pallas as pl
from jax.experimental.pallas import tpu as pltpu


def nest_mlp_kernel(xt_ref, w1_ref, b1_ref, w2_ref, b2_ref, w3_ref, b3_ref,
                    o_ref):
    cdt = w1_ref.dtype                        # MXU input dtype (bf16 or f32)
    x = xt_ref[...]                           # (20, TILE_B), batch on lanes

    # Linear(20, 64) + ReLU. Bias-add/ReLU on the f32 accumulator, then bind
    # the downcast once so the f32 (64, tile) temporary dies immediately.
    h1 = jnp.dot(w1_ref[...], x, preferred_element_type=jnp.float32)
    h1 = jnp.maximum(h1 + b1_ref[...], 0.0).astype(cdt)      # (64, TILE_B)

    # Linear(64, 32) + ReLU
    h2 = jnp.dot(w2_ref[...], h1, preferred_element_type=jnp.float32)
    h2 = jnp.maximum(h2 + b2_ref[...], 0.0).astype(cdt)      # (32, TILE_B)

    # Linear(32, 16)
    out = jnp.dot(w3_ref[...], h2, preferred_element_type=jnp.float32)
    o_ref[...] = (out + b3_ref[...]).astype(o_ref.dtype)     # (16, TILE_B)


def prepare_params(params, *, use_bf16=True):
    """One-time parameter preprocessing (hoisted out of the per-call path).

    Weights keep the native PyTorch (out_features, in_features) layout, which
    is exactly what the feature-major kernel wants.  Biases become
    (out_features, 1) f32 columns that broadcast along the lane (batch) axis;
    they stay f32 because bias-add/ReLU run on the f32 accumulator.
    """
    cdt = jnp.bfloat16 if use_bf16 else jnp.float32
    return {
        "w1": params["w1"].astype(cdt),                         # (64, 20)
        "b1": params["b1"].reshape(-1, 1).astype(jnp.float32),  # (64, 1)
        "w2": params["w2"].astype(cdt),                         # (32, 64)
        "b2": params["b2"].reshape(-1, 1).astype(jnp.float32),  # (32, 1)
        "w3": params["w3"].astype(cdt),                         # (16, 32)
        "b3": params["b3"].reshape(-1, 1).astype(jnp.float32),  # (16, 1)
    }


def _round_up(v, m):
    return ((v + m - 1) // m) * m


@functools.partial(jax.jit, static_argnames=("tile_b", "out_dtype"))
def nest_mlp(x, prepared, *, tile_b=8192, out_dtype=jnp.float32):
    """x: (B, 20). prepared: output of prepare_params(). Returns (B, 16)."""
    assert tile_b % 128 == 0, "batch tile must be a multiple of 128 lanes"
    B = x.shape[0]
    cdt = prepared["w1"].dtype

    # ---- tile / grid selection -------------------------------------------
    b128 = _round_up(B, 128)          # always lane-dense (unmasked stores)
    if b128 <= 2 * 128:
        tile = b128                   # tiny batch: one small lane-dense tile
    else:
        # >=2 grid steps so v7x can shard across both TensorCores, capped by
        # tile_b which respects the per-generation VMEM budget below.
        tile = max(128, min(tile_b, _round_up(pl.cdiv(B, 2), 128)))
    n_tiles = pl.cdiv(B, tile)
    b_pad = n_tiles * tile

    # ---- wrapper-side layout plumbing (bf16 first, so extra passes move
    # half the bytes; pad rows produce bias garbage that is sliced off) -----
    xc = x.astype(cdt)
    if b_pad != B:
        xc = jnp.pad(xc, ((0, b_pad - B), (0, 0)))
    xt = xc.T                                  # (20, b_pad): batch on lanes

    const = lambda shape: pl.BlockSpec(shape, lambda i: (0, 0))  # VMEM-resident

    in_bytes = 20 * jnp.dtype(cdt).itemsize
    out_bytes = 16 * jnp.dtype(out_dtype).itemsize
    cost = pl.CostEstimate(
        flops=2 * (20 * 64 + 64 * 32 + 32 * 16) * b_pad,        # 7680 / elem
        transcendentals=0,
        bytes_accessed=(in_bytes + out_bytes) * b_pad + 16 * 1024)

    out_t = pl.pallas_call(
        nest_mlp_kernel,
        out_shape=jax.ShapeDtypeStruct((16, b_pad), out_dtype),
        grid=(n_tiles,),
        in_specs=[
            pl.BlockSpec((20, tile), lambda i: (0, i)),   # streamed X^T tiles
            const((64, 20)), const((64, 1)),              # resident params
            const((32, 64)), const((32, 1)),
            const((16, 32)), const((16, 1)),
        ],
        out_specs=pl.BlockSpec((16, tile), lambda i: (0, i)),
        compiler_params=pltpu.CompilerParams(
            dimension_semantics=("parallel",),            # v7x: 2 TensorCores
            vmem_limit_bytes=32 * 1024 * 1024),           # safe on v5e..v7x
        cost_estimate=cost,
    )(xt, prepared["w1"], prepared["b1"], prepared["w2"], prepared["b2"],
      prepared["w3"], prepared["b3"])

    # TODO(synk): if the consumer accepts feature-major (16, B), return out_t
    # directly and skip this transpose (it is a full extra HBM pass).
    return out_t.T[:B]


def init_params(key):
    """Deterministic init matching nn.Linear shapes (out_features, in_features)."""
    ks = jax.random.split(key, 6)

    def uniform(k, shape, fan_in):
        bound = 1.0 / jnp.sqrt(fan_in)
        return jax.random.uniform(k, shape, jnp.float32, -bound, bound)

    return {
        "w1": uniform(ks[0], (64, 20), 20),
        "b1": uniform(ks[1], (64,), 20),
        "w2": uniform(ks[2], (32, 64), 64),
        "b2": uniform(ks[3], (32,), 64),
        "w3": uniform(ks[4], (16, 32), 32),
        "b3": uniform(ks[5], (16,), 32),
    }


def nest_mlp_ref(x, p):
    h1 = jnp.maximum(x @ p["w1"].T + p["b1"], 0.0)
    h2 = jnp.maximum(h1 @ p["w2"].T + p["b2"], 0.0)
    return h2 @ p["w3"].T + p["b3"]


if __name__ == "__main__":
    key = jax.random.PRNGKey(0)
    kx, kx2, kp = jax.random.split(key, 3)

    params = init_params(kp)

    # 1) Small batch, f32 everywhere: exact check against the reference
    #    (single lane-dense 128-wide tile, padded rows sliced off).
    B = 8
    x = jax.random.normal(kx, (B, 20), jnp.float32)
    prepared_f32 = prepare_params(params, use_bf16=False)
    out = nest_mlp(x, prepared_f32)
    jax.block_until_ready(out)
    ref = nest_mlp_ref(x, params)
    assert out.shape == (B, 16)
    assert jnp.allclose(out, ref, atol=1e-4, rtol=1e-4)

    # 2) Multi-tile grid path (batch tiling + padding), still f32.
    B2 = 300
    x2 = jax.random.normal(kx2, (B2, 20), jnp.float32)
    out2 = nest_mlp(x2, prepared_f32, tile_b=128)      # forces 3 grid steps
    jax.block_until_ready(out2)
    ref2 = nest_mlp_ref(x2, params)
    assert out2.shape == (B2, 16)
    assert jnp.allclose(out2, ref2, atol=1e-4, rtol=1e-4)

    # 3) Default (large-tile) path, which clamps to >=2 grid steps for B>256.
    prepared_bf16 = prepare_params(params, use_bf16=True)
    out3 = nest_mlp(x2, prepared_bf16)
    jax.block_until_ready(out3)
    assert out3.shape == (B2, 16)
    assert float(jnp.max(jnp.abs(out3 - ref2))) < 2e-1  # bf16-input tolerance

    # 4) Optional bf16 output (reduced output HBM traffic) — shape/dtype check.
    out4 = nest_mlp(x2, prepared_bf16, out_dtype=jnp.bfloat16)
    jax.block_until_ready(out4)
    assert out4.shape == (B2, 16) and out4.dtype == jnp.bfloat16
    assert float(jnp.max(jnp.abs(out4.astype(jnp.float32) - ref2))) < 3e-1

    print("KERNEL_OK")
</pallas_src>

<mosaic_0001>
module attributes {stable_mosaic.version = 11 : i64} {
  func.func @nest_mlp_kernel(%arg0: i32, %arg1: memref<20x128xf32, #tpu.memory_space<vmem>>, %arg2: memref<64x20xf32, #tpu.memory_space<vmem>>, %arg3: memref<64x1xf32, #tpu.memory_space<vmem>>, %arg4: memref<32x64xf32, #tpu.memory_space<vmem>>, %arg5: memref<32x1xf32, #tpu.memory_space<vmem>>, %arg6: memref<16x32xf32, #tpu.memory_space<vmem>>, %arg7: memref<16x1xf32, #tpu.memory_space<vmem>>, %arg8: memref<16x128xf32, #tpu.memory_space<vmem>>) attributes {dimension_semantics = [#tpu.dimension_semantics<parallel>], iteration_bounds = array<i64: 1>, scalar_prefetch = 0 : i64, scratch_operands = 0 : i64, tpu.core_type = #tpu.core_type<tc>, window_params = [{transform_indices = @transform_0, window_bounds = array<i64: 20, 128>}, {pipeline_mode = #tpu.pipeline_mode<synchronous>, transform_indices = @transform_1, window_bounds = array<i64: 64, 20>}, {pipeline_mode = #tpu.pipeline_mode<synchronous>, transform_indices = @transform_2, window_bounds = array<i64: 64, 1>}, {pipeline_mode = #tpu.pipeline_mode<synchronous>, transform_indices = @transform_3, window_bounds = array<i64: 32, 64>}, {pipeline_mode = #tpu.pipeline_mode<synchronous>, transform_indices = @transform_4, window_bounds = array<i64: 32, 1>}, {pipeline_mode = #tpu.pipeline_mode<synchronous>, transform_indices = @transform_5, window_bounds = array<i64: 16, 32>}, {pipeline_mode = #tpu.pipeline_mode<synchronous>, transform_indices = @transform_6, window_bounds = array<i64: 16, 1>}, {transform_indices = @transform_7, window_bounds = array<i64: 16, 128>}]} {
    %c0 = arith.constant 0 : index
    %c0_0 = arith.constant 0 : index
    %0 = vector.load %arg1[%c0, %c0_0] : memref<20x128xf32, #tpu.memory_space<vmem>>, vector<20x128xf32>
    %c0_1 = arith.constant 0 : index
    %c0_2 = arith.constant 0 : index
    %1 = vector.load %arg2[%c0_1, %c0_2] : memref<64x20xf32, #tpu.memory_space<vmem>>, vector<64x20xf32>
    %cst = arith.constant dense<0.000000e+00> : vector<64x128xf32>
    %2 = tpu.matmul %1, %0, %cst {dimension_numbers = #tpu.dot_dimension_numbers<[1], [0], [0], [1], [0, 0, 1, 1], [], []>} : vector<64x20xf32>, vector<20x128xf32>, vector<64x128xf32> -> vector<64x128xf32>
    %c0_3 = arith.constant 0 : index
    %c0_4 = arith.constant 0 : index
    %3 = vector.load %arg3[%c0_3, %c0_4] : memref<64x1xf32, #tpu.memory_space<vmem>>, vector<64x1xf32>
    %4 = vector.broadcast %3 : vector<64x1xf32> to vector<64x128xf32>
    %5 = arith.addf %2, %4 : vector<64x128xf32>
    %cst_5 = arith.constant 0.000000e+00 : f32
    %6 = vector.broadcast %cst_5 : f32 to vector<64x128xf32>
    %7 = arith.maximumf %5, %6 : vector<64x128xf32>
    %c0_6 = arith.constant 0 : index
    %c0_7 = arith.constant 0 : index
    %8 = vector.load %arg4[%c0_6, %c0_7] : memref<32x64xf32, #tpu.memory_space<vmem>>, vector<32x64xf32>
    %cst_8 = arith.constant dense<0.000000e+00> : vector<32x128xf32>
    %9 = tpu.matmul %8, %7, %cst_8 {dimension_numbers = #tpu.dot_dimension_numbers<[1], [0], [0], [1], [0, 0, 1, 1], [], []>} : vector<32x64xf32>, vector<64x128xf32>, vector<32x128xf32> -> vector<32x128xf32>
    %c0_9 = arith.constant 0 : index
    %c0_10 = arith.constant 0 : index
    %10 = vector.load %arg5[%c0_9, %c0_10] : memref<32x1xf32, #tpu.memory_space<vmem>>, vector<32x1xf32>
    %11 = vector.broadcast %10 : vector<32x1xf32> to vector<32x128xf32>
    %12 = arith.addf %9, %11 : vector<32x128xf32>
    %cst_11 = arith.constant 0.000000e+00 : f32
    %13 = vector.broadcast %cst_11 : f32 to vector<32x128xf32>
    %14 = arith.maximumf %12, %13 : vector<32x128xf32>
    %c0_12 = arith.constant 0 : index
    %c0_13 = arith.constant 0 : index
    %15 = vector.load %arg6[%c0_12, %c0_13] : memref<16x32xf32, #tpu.memory_space<vmem>>, vector<16x32xf32>
    %cst_14 = arith.constant dense<0.000000e+00> : vector<16x128xf32>
    %16 = tpu.matmul %15, %14, %cst_14 {dimension_numbers = #tpu.dot_dimension_numbers<[1], [0], [0], [1], [0, 0, 1, 1], [], []>} : vector<16x32xf32>, vector<32x128xf32>, vector<16x128xf32> -> vector<16x128xf32>
    %c0_15 = arith.constant 0 : index
    %c0_16 = arith.constant 0 : index
    %17 = vector.load %arg7[%c0_15, %c0_16] : memref<16x1xf32, #tpu.memory_space<vmem>>, vector<16x1xf32>
    %18 = vector.broadcast %17 : vector<16x1xf32> to vector<16x128xf32>
    %19 = arith.addf %16, %18 : vector<16x128xf32>
    %c0_17 = arith.constant 0 : index
    %c0_18 = arith.constant 0 : index
    %20 = vector.load %arg8[%c0_17, %c0_18] : memref<16x128xf32, #tpu.memory_space<vmem>>, vector<16x128xf32>
    tpu.vector_store %arg8[%c0_17, %c0_18], %19 {strides = array<i32>} : memref<16x128xf32, #tpu.memory_space<vmem>>, vector<16x128xf32>,
    return
  }
  func.func @transform_0(%arg0: i32) -> (i32, i32) {
    %c0_i32 = arith.constant 0 : i32
    %c0_i32_0 = arith.constant 0 : i32
    return %c0_i32, %arg0 : i32, i32
  }
  func.func @transform_1(%arg0: i32) -> (i32, i32) {
    %c0_i32 = arith.constant 0 : i32
    %c0_i32_0 = arith.constant 0 : i32
    %c0_i32_1 = arith.constant 0 : i32
    return %c0_i32, %c0_i32_0 : i32, i32
  }
  func.func @transform_2(%arg0: i32) -> (i32, i32) {
    %c0_i32 = arith.constant 0 : i32
    %c0_i32_0 = arith.constant 0 : i32
    %c0_i32_1 = arith.constant 0 : i32
    return %c0_i32, %c0_i32_0 : i32, i32
  }
  func.func @transform_3(%arg0: i32) -> (i32, i32) {
    %c0_i32 = arith.constant 0 : i32
    %c0_i32_0 = arith.constant 0 : i32
    %c0_i32_1 = arith.constant 0 : i32
    return %c0_i32, %c0_i32_0 : i32, i32
  }
  func.func @transform_4(%arg0: i32) -> (i32, i32) {
    %c0_i32 = arith.constant 0 : i32
    %c0_i32_0 = arith.constant 0 : i32
    %c0_i32_1 = arith.constant 0 : i32
    return %c0_i32, %c0_i32_0 : i32, i32
  }
  func.func @transform_5(%arg0: i32) -> (i32, i32) {
    %c0_i32 = arith.constant 0 : i32
    %c0_i32_0 = arith.constant 0 : i32
    %c0_i32_1 = arith.constant 0 : i32
    return %c0_i32, %c0_i32_0 : i32, i32
  }
  func.func @transform_6(%arg0: i32) -> (i32, i32) {
    %c0_i32 = arith.constant 0 : i32
    %c0_i32_0 = arith.constant 0 : i32
    %c0_i32_1 = arith.constant 0 : i32
    return %c0_i32, %c0_i32_0 : i32, i32
  }
  func.func @transform_7(%arg0: i32) -> (i32, i32) {
    %c0_i32 = arith.constant 0 : i32
    %c0_i32_0 = arith.constant 0 : i32
    return %c0_i32, %arg0 : i32, i32
  }
}

</mosaic_0001>

<llo_original>
// kernel: nest_mlp.1
$region0: #{nest_mlp.1}
  #allocation0 [shape = 'u32[]', space=smem, size = 0x4, offset = 0x4, fixed_abs, tag = 'smem constant byte address 0x4 - core index']
  #allocation1 [shape = 'u32[144,128]{1,0:T(1,128)}', space=vmem, size = 0x12000, scoped, tag = 'internal scratch']
  %s0 = inlined_call_operand.vmem [shape: f32[20,128], index: 0, kind: input, shape index: {}]
  %s1 = inlined_call_operand.vmem [shape: f32[64,20], index: 1, kind: input, shape index: {}]
  %s2 = inlined_call_operand.vmem [shape: f32[64,1], index: 2, kind: input, shape index: {}]
  %s3 = inlined_call_operand.vmem [shape: f32[32,64], index: 3, kind: input, shape index: {}]
  %s4 = inlined_call_operand.vmem [shape: f32[32,1], index: 4, kind: input, shape index: {}]
  %s5 = inlined_call_operand.vmem [shape: f32[16,32], index: 5, kind: input, shape index: {}]
  %s6 = inlined_call_operand.vmem [shape: f32[16,1], index: 6, kind: input, shape index: {}]
  %s7 = inlined_call_operand.vmem [shape: f32[16,128], index: 7, kind: output, shape index: {}]
  %s8 = sld [smem:[#allocation0]]
  $region38: #{nest_mlp.1} parent=0
    _
  %s10 = ssub.s32 1, %s8
  %s11 = scalar_select 0, %s10, %s8
  // Predicated region
  $region2: #{nest_mlp.1} parent=0 // pred_check
    _
  $region3: #{nest_mlp.1} parent=0 // pred_check_branch
    %13 = sbr.rel (0) target = $region5
  $region4: #{nest_mlp.1} parent=0 // pred_region
    _
  $region5: #{nest_mlp.1} parent=0 // pred_fallthru
    _
  // Predicated region
  $region6: #{nest_mlp.1} parent=0 // pred_check
    _
  $region7: #{nest_mlp.1} parent=0 // pred_check_branch
    %15 = sbr.rel (0) target = $region9
  $region8: #{nest_mlp.1} parent=0 // pred_region
    _
  $region9: #{nest_mlp.1} parent=0 // pred_fallthru
    _
  // Predicated region
  $region10: #{nest_mlp.1} parent=0 // pred_check
    _
  $region11: #{nest_mlp.1} parent=0 // pred_check_branch
    %17 = sbr.rel (0) target = $region13
  $region12: #{nest_mlp.1} parent=0 // pred_region
    _
  $region13: #{nest_mlp.1} parent=0 // pred_fallthru
    _
  // Predicated region
  $region14: #{nest_mlp.1} parent=0 // pred_check
    _
  $region15: #{nest_mlp.1} parent=0 // pred_check_branch
    %19 = sbr.rel (0) target = $region17
  $region16: #{nest_mlp.1} parent=0 // pred_region
    _
  $region17: #{nest_mlp.1} parent=0 // pred_fallthru
    _
  // Predicated region
  $region18: #{nest_mlp.1} parent=0 // pred_check
    _
  $region19: #{nest_mlp.1} parent=0 // pred_check_branch
    %21 = sbr.rel (0) target = $region21
  $region20: #{nest_mlp.1} parent=0 // pred_region
    _
  $region21: #{nest_mlp.1} parent=0 // pred_fallthru
    _
  // Predicated region
  $region22: #{nest_mlp.1} parent=0 // pred_check
    _
  $region23: #{nest_mlp.1} parent=0 // pred_check_branch
    %23 = sbr.rel (0) target = $region25
  $region24: #{nest_mlp.1} parent=0 // pred_region
    _
  $region25: #{nest_mlp.1} parent=0 // pred_fallthru
    _
  // Predicated region
  $region26: #{nest_mlp.1} parent=0 // pred_check
    _
  $region27: #{nest_mlp.1} parent=0 // pred_check_branch
    %25 = sbr.rel (0) target = $region29
  $region28: #{nest_mlp.1} parent=0 // pred_region
    _
  $region29: #{nest_mlp.1} parent=0 // pred_fallthru
    _
  %v26 = vld [vmem:[%s0] sm:$0xff]
  %v27 = vld [vmem:[%s0 + $0x8] sm:$0xff]
  %v28 = vld [vmem:[%s0 + $0x10] sm:$0xf]
  %v29 = vld [vmem:[%s1] sm:$0xff]
  %v30 = vld [vmem:[%s1 + $0x8] sm:$0xff]
  %v31 = vld [vmem:[%s1 + $0x10] sm:$0xff]
  %v32 = vld [vmem:[%s1 + $0x18] sm:$0xff]
  %v33 = vld [vmem:[%s1 + $0x20] sm:$0xff]
  %v34 = vld [vmem:[%s1 + $0x28] sm:$0xff]
  %v35 = vld [vmem:[%s1 + $0x30] sm:$0xff]
  %v36 = vld [vmem:[%s1 + $0x38] sm:$0xff]
  %v37 = vld [vmem:[%s2] sm:$0xff]
  %v38 = vld [vmem:[%s2 + $0x8] sm:$0xff]
  %v39 = vld [vmem:[%s2 + $0x10] sm:$0xff]
  %v40 = vld [vmem:[%s2 + $0x18] sm:$0xff]
  %v41 = vld [vmem:[%s2 + $0x20] sm:$0xff]
  %v42 = vld [vmem:[%s2 + $0x28] sm:$0xff]
  %v43 = vld [vmem:[%s2 + $0x30] sm:$0xff]
  %v44 = vld [vmem:[%s2 + $0x38] sm:$0xff]
  %46 = vset.pattern.permute.xlu0 0
  %47 = vperm.xlu0 %46, %v37
  %v48 = vpop.permute.xlu0 %47
  %51 = vset.pattern.permute.xlu0 0
  %52 = vperm.xlu0 %51, %v38
  %v53 = vpop.permute.xlu0 %52
  %56 = vset.pattern.permute.xlu0 0
  %57 = vperm.xlu0 %56, %v39
  %v58 = vpop.permute.xlu0 %57
  %61 = vset.pattern.permute.xlu0 0
  %62 = vperm.xlu0 %61, %v40
  %v63 = vpop.permute.xlu0 %62
  %66 = vset.pattern.permute.xlu0 0
  %67 = vperm.xlu0 %66, %v41
  %v68 = vpop.permute.xlu0 %67
  %71 = vset.pattern.permute.xlu0 0
  %72 = vperm.xlu0 %71, %v42
  %v73 = vpop.permute.xlu0 %72
  %76 = vset.pattern.permute.xlu0 0
  %77 = vperm.xlu0 %76, %v43
  %v78 = vpop.permute.xlu0 %77
  %81 = vset.pattern.permute.xlu0 0
  %82 = vperm.xlu0 %81, %v44
  %v83 = vpop.permute.xlu0 %82
  %vm85 = vcmask 162816
  %v87 = vsel %vm85, %v29, 0
  %v90 = vsel %vm85, %v30, 0
  %v93 = vsel %vm85, %v31, 0
  %v96 = vsel %vm85, %v32, 0
  %v99 = vsel %vm85, %v33, 0
  %v102 = vsel %vm85, %v34, 0
  %v105 = vsel %vm85, %v35, 0
  %v108 = vsel %vm85, %v36, 0
  %vm110 = vcmask 1043456
  %v112 = vsel %vm110, %v28, 0
  %114 = vmatprep.subr.mxu0 0.0
  %115 = vmatpush1.msra.mxu0 %v26
  %116 = vmatprep.subr.mxu0 0.0
  %117 = vmatpush1.msra.mxu0 %v27
  %118 = vmatprep.subr.mxu0 0.0
  %119 = vmatpush1.msra.mxu0 %v112
  %120 = vmatprep.subr.mxu0 0.0
  %121 = vmatpush1.msra.mxu0 0.0
  %122 = vmatprep.subr.mxu0 0.0
  %123 = vmatpush1.msra.mxu0 0.0
  %124 = vmatprep.subr.mxu0 0.0
  %125 = vmatpush1.msra.mxu0 0.0
  %126 = vmatprep.subr.mxu0 0.0
  %127 = vmatpush1.msra.mxu0 0.0
  %128 = vmatprep.subr.mxu0 0.0
  %129 = vmatpush1.msra.mxu0 0.0
  %130 = vmatprep.subr.mxu0 0.0
  %131 = vmatpush1.msra.mxu0 0.0
  %132 = vmatprep.subr.mxu0 0.0
  %133 = vmatpush1.msra.mxu0 0.0
  %134 = vmatprep.subr.mxu0 0.0
  %135 = vmatpush1.msra.mxu0 0.0
  %136 = vmatprep.subr.mxu0 0.0
  %137 = vmatpush1.msra.mxu0 0.0
  %138 = vmatprep.subr.mxu0 0.0
  %139 = vmatpush1.msra.mxu0 0.0
  %140 = vmatprep.subr.mxu0 0.0
  %141 = vmatpush1.msra.mxu0 0.0
  %142 = vmatprep.subr.mxu0 0.0
  %143 = vmatpush1.msra.mxu0 0.0
  %144 = vmatprep.subr.mxu0 0.0
  %145 = vmatpush1.msra.mxu0 0.0
  %146 = vmatprep.subr.mxu0 0.0
  %147 = vmatpush1.msra.mxu0 0.0
  %148 = vmatprep.subr.mxu0 0.0
  %149 = vmatpush1.msra.mxu0 0.0
  %150 = vmatprep.subr.mxu0 0.0
  %151 = vmatpush1.msra.mxu0 0.0
  %152 = vmatprep.subr.mxu0 0.0
  %153 = vmatpush1.msra.mxu0 0.0
  %154 = vmatprep.subr.mxu0 0.0
  %155 = vmatpush1.msra.mxu0 0.0
  %156 = vmatprep.subr.mxu0 0.0
  %157 = vmatpush1.msra.mxu0 0.0
  %158 = vmatprep.subr.mxu0 0.0
  %159 = vmatpush1.msra.mxu0 0.0
  %160 = vmatprep.subr.mxu0 0.0
  %161 = vmatpush1.msra.mxu0 0.0
  %162 = vmatprep.subr.mxu0 0.0
  %163 = vmatpush1.msra.mxu0 0.0
  %164 = vmatprep.subr.mxu0 0.0
  %165 = vmatpush1.msra.mxu0 0.0
  %166 = vmatprep.subr.mxu0 0.0
  %167 = vmatpush1.msra.mxu0 0.0
  %168 = vmatprep.subr.mxu0 0.0
  %169 = vmatpush1.msra.mxu0 0.0
  %170 = vmatprep.subr.mxu0 0.0
  %171 = vmatpush1.msra.mxu0 0.0
  %172 = vmatprep.subr.mxu0 0.0
  %173 = vmatpush1.msra.mxu0 0.0
  %174 = vmatprep.subr.mxu0 0.0
  %175 = vmatpush1.msra.mxu0 0.0
  %176 = vmatprep.subr.mxu0 0.0
  %177 = vmatpush1.msra.mxu0 0.0
  %178 = vmatprep.mubr.f32.mxu0 0.0
  %179 = vmatmul.mubr.f32.gmra.mrb[0].mxu0 %v87
  %v180 = vpop.f32.mrb[0].mxu0
  %v181 = vadd.f32 %v48, %v180
  %v182 = vpop.f32.mrb[0].mxu0
  %183 = vmatprep.mubr.f32.mxu0 0.0
  %184 = vmatmul.mubr.f32.gmra.mrb[0].mxu0 %v90
  %v185 = vpop.f32.mrb[0].mxu0
  %v186 = vadd.f32 %v53, %v185
  %v187 = vpop.f32.mrb[0].mxu0
  %188 = vmatprep.mubr.f32.mxu0 0.0
  %189 = vmatmul.mubr.f32.gmra.mrb[0].mxu0 %v93
  %v190 = vpop.f32.mrb[0].mxu0
  %v191 = vadd.f32 %v58, %v190
  %v192 = vpop.f32.mrb[0].mxu0
  %193 = vmatprep.mubr.f32.mxu0 0.0
  %194 = vmatmul.mubr.f32.gmra.mrb[0].mxu0 %v96
  %v195 = vpop.f32.mrb[0].mxu0
  %v196 = vadd.f32 %v63, %v195
  %v197 = vpop.f32.mrb[0].mxu0
  %198 = vmatprep.mubr.f32.mxu0 0.0
  %199 = vmatmul.mubr.f32.gmra.mrb[0].mxu0 %v99
  %v200 = vpop.f32.mrb[0].mxu0
  %v201 = vadd.f32 %v68, %v200
  %v202 = vpop.f32.mrb[0].mxu0
  %203 = vmatprep.mubr.f32.mxu0 0.0
  %204 = vmatmul.mubr.f32.gmra.mrb[0].mxu0 %v102
  %v205 = vpop.f32.mrb[0].mxu0
  %v206 = vadd.f32 %v73, %v205
  %v207 = vpop.f32.mrb[0].mxu0
  %208 = vmatprep.mubr.f32.mxu0 0.0
  %209 = vmatmul.mubr.f32.gmra.mrb[0].mxu0 %v105
  %v210 = vpop.f32.mrb[0].mxu0
  %v211 = vadd.f32 %v78, %v210
  %v212 = vpop.f32.mrb[0].mxu0
  %213 = vmatprep.mubr.f32.mxu0 0.0
  %214 = vmatmul.mubr.f32.gmra.mrb[0].mxu0 %v108
  %v215 = vpop.f32.mrb[0].mxu0
  %v216 = vadd.f32 %v83, %v215
  %v217 = vpop.f32.mrb[0].mxu0
  %218 = vdwg.mxu0
  %v219 = vmax.f32 %v181, 0.0
  %v220 = vmax.f32 %v186, 0.0
  %v221 = vmax.f32 %v191, 0.0
  %v222 = vmax.f32 %v196, 0.0
  %v223 = vmax.f32 %v201, 0.0
  %v224 = vmax.f32 %v206, 0.0
  %v225 = vmax.f32 %v211, 0.0
  %v226 = vmax.f32 %v216, 0.0
  %v227 = vld [vmem:[%s3] sm:$0xff]
  %v228 = vld [vmem:[%s3 + $0x8] sm:$0xff]
  %v229 = vld [vmem:[%s3 + $0x10] sm:$0xff]
  %v230 = vld [vmem:[%s3 + $0x18] sm:$0xff]
  %v231 = vld [vmem:[%s4] sm:$0xff]
  %v232 = vld [vmem:[%s4 + $0x8] sm:$0xff]
  %v233 = vld [vmem:[%s4 + $0x10] sm:$0xff]
  %v234 = vld [vmem:[%s4 + $0x18] sm:$0xff]
  %236 = vset.pattern.permute.xlu0 0
  %237 = vperm.xlu0 %236, %v231
  %v238 = vpop.permute.xlu0 %237
  %241 = vset.pattern.permute.xlu0 0
  %242 = vperm.xlu0 %241, %v232
  %v243 = vpop.permute.xlu0 %242
  %246 = vset.pattern.permute.xlu0 0
  %247 = vperm.xlu0 %246, %v233
  %v248 = vpop.permute.xlu0 %247
  %251 = vset.pattern.permute.xlu0 0
  %252 = vperm.xlu0 %251, %v234
  %v253 = vpop.permute.xlu0 %252
  %vm255 = vcmask 523264
  %v257 = vsel %vm255, %v227, 0
  %v260 = vsel %vm255, %v228, 0
  %v263 = vsel %vm255, %v229, 0
  %v266 = vsel %vm255, %v230, 0
  %268 = vmatprep.subr.mxu0 0.0
  %269 = vmatpush1.msra.mxu0 %v219
  %270 = vmatprep.subr.mxu0 0.0
  %271 = vmatpush1.msra.mxu0 %v220
  %272 = vmatprep.subr.mxu0 0.0
  %273 = vmatpush1.msra.mxu0 %v221
  %274 = vmatprep.subr.mxu0 0.0
  %275 = vmatpush1.msra.mxu0 %v222
  %276 = vmatprep.subr.mxu0 0.0
  %277 = vmatpush1.msra.mxu0 %v223
  %278 = vmatprep.subr.mxu0 0.0
  %279 = vmatpush1.msra.mxu0 %v224
  %280 = vmatprep.subr.mxu0 0.0
  %281 = vmatpush1.msra.mxu0 %v225
  %282 = vmatprep.subr.mxu0 0.0
  %283 = vmatpush1.msra.mxu0 %v226
  %284 = vmatprep.subr.mxu0 0.0
  %285 = vmatpush1.msra.mxu0 0.0
  %286 = vmatprep.subr.mxu0 0.0
  %287 = vmatpush1.msra.mxu0 0.0
  %288 = vmatprep.subr.mxu0 0.0
  %289 = vmatpush1.msra.mxu0 0.0
  %290 = vmatprep.subr.mxu0 0.0
  %291 = vmatpush1.msra.mxu0 0.0
  %292 = vmatprep.subr.mxu0 0.0
  %293 = vmatpush1.msra.mxu0 0.0
  %294 = vmatprep.subr.mxu0 0.0
  %295 = vmatpush1.msra.mxu0 0.0
  %296 = vmatprep.subr.mxu0 0.0
  %297 = vmatpush1.msra.mxu0 0.0
  %298 = vmatprep.subr.mxu0 0.0
  %299 = vmatpush1.msra.mxu0 0.0
  %300 = vmatprep.subr.mxu0 0.0
  %301 = vmatpush1.msra.mxu0 0.0
  %302 = vmatprep.subr.mxu0 0.0
  %303 = vmatpush1.msra.mxu0 0.0
  %304 = vmatprep.subr.mxu0 0.0
  %305 = vmatpush1.msra.mxu0 0.0
  %306 = vmatprep.subr.mxu0 0.0
  %307 = vmatpush1.msra.mxu0 0.0
  %308 = vmatprep.subr.mxu0 0.0
  %309 = vmatpush1.msra.mxu0 0.0
  %310 = vmatprep.subr.mxu0 0.0
  %311 = vmatpush1.msra.mxu0 0.0
  %312 = vmatprep.subr.mxu0 0.0
  %313 = vmatpush1.msra.mxu0 0.0
  %314 = vmatprep.subr.mxu0 0.0
  %315 = vmatpush1.msra.mxu0 0.0
  %316 = vmatprep.subr.mxu0 0.0
  %317 = vmatpush1.msra.mxu0 0.0
  %318 = vmatprep.subr.mxu0 0.0
  %319 = vmatpush1.msra.mxu0 0.0
  %320 = vmatprep.subr.mxu0 0.0
  %321 = vmatpush1.msra.mxu0 0.0
  %322 = vmatprep.subr.mxu0 0.0
  %323 = vmatpush1.msra.mxu0 0.0
  %324 = vmatprep.subr.mxu0 0.0
  %325 = vmatpush1.msra.mxu0 0.0
  %326 = vmatprep.subr.mxu0 0.0
  %327 = vmatpush1.msra.mxu0 0.0
  %328 = vmatprep.subr.mxu0 0.0
  %329 = vmatpush1.msra.mxu0 0.0
  %330 = vmatprep.subr.mxu0 0.0
  %331 = vmatpush1.msra.mxu0 0.0
  %332 = vmatprep.mubr.f32.mxu0 0.0
  %333 = vmatmul.mubr.f32.gmra.mrb[0].mxu0 %v257
  %v334 = vpop.f32.mrb[0].mxu0
  %v335 = vadd.f32 %v238, %v334
  %v336 = vpop.f32.mrb[0].mxu0
  %337 = vmatprep.mubr.f32.mxu0 0.0
  %338 = vmatmul.mubr.f32.gmra.mrb[0].mxu0 %v260
  %v339 = vpop.f32.mrb[0].mxu0
  %v340 = vadd.f32 %v243, %v339
  %v341 = vpop.f32.mrb[0].mxu0
  %342 = vmatprep.mubr.f32.mxu0 0.0
  %343 = vmatmul.mubr.f32.gmra.mrb[0].mxu0 %v263
  %v344 = vpop.f32.mrb[0].mxu0
  %v345 = vadd.f32 %v248, %v344
  %v346 = vpop.f32.mrb[0].mxu0
  %347 = vmatprep.mubr.f32.mxu0 0.0
  %348 = vmatmul.mubr.f32.gmra.mrb[0].mxu0 %v266
  %v349 = vpop.f32.mrb[0].mxu0
  %v350 = vadd.f32 %v253, %v349
  %v351 = vpop.f32.mrb[0].mxu0
  %352 = vdwg.mxu0
  %v353 = vmax.f32 %v335, 0.0
  %v354 = vmax.f32 %v340, 0.0
  %v355 = vmax.f32 %v345, 0.0
  %v356 = vmax.f32 %v350, 0.0
  %v357 = vld [vmem:[%s5] sm:$0xff]
  %v358 = vld [vmem:[%s5 + $0x8] sm:$0xff]
  %v359 = vld [vmem:[%s6] sm:$0xff]
  %v360 = vld [vmem:[%s6 + $0x8] sm:$0xff]
  %362 = vset.pattern.permute.xlu0 0
  %363 = vperm.xlu0 %362, %v359
  %v364 = vpop.permute.xlu0 %363
  %367 = vset.pattern.permute.xlu0 0
  %368 = vperm.xlu0 %367, %v360
  %v369 = vpop.permute.xlu0 %368
  %vm371 = vcmask 261120
  %v373 = vsel %vm371, %v357, 0
  %v376 = vsel %vm371, %v358, 0
  %378 = vmatprep.subr.mxu0 0.0
  %379 = vmatpush1.msra.mxu0 %v353
  %380 = vmatprep.subr.mxu0 0.0
  %381 = vmatpush1.msra.mxu0 %v354
  %382 = vmatprep.subr.mxu0 0.0
  %383 = vmatpush1.msra.mxu0 %v355
  %384 = vmatprep.subr.mxu0 0.0
  %385 = vmatpush1.msra.mxu0 %v356
  %386 = vmatprep.subr.mxu0 0.0
  %387 = vmatpush1.msra.mxu0 0.0
  %388 = vmatprep.subr.mxu0 0.0
  %389 = vmatpush1.msra.mxu0 0.0
  %390 = vmatprep.subr.mxu0 0.0
  %391 = vmatpush1.msra.mxu0 0.0
  %392 = vmatprep.subr.mxu0 0.0
  %393 = vmatpush1.msra.mxu0 0.0
  %394 = vmatprep.subr.mxu0 0.0
  %395 = vmatpush1.msra.mxu0 0.0
  %396 = vmatprep.subr.mxu0 0.0
  %397 = vmatpush1.msra.mxu0 0.0
  %398 = vmatprep.subr.mxu0 0.0
  %399 = vmatpush1.msra.mxu0 0.0
  %400 = vmatprep.subr.mxu0 0.0
  %401 = vmatpush1.msra.mxu0 0.0
  %402 = vmatprep.subr.mxu0 0.0
  %403 = vmatpush1.msra.mxu0 0.0
  %404 = vmatprep.subr.mxu0 0.0
  %405 = vmatpush1.msra.mxu0 0.0
  %406 = vmatprep.subr.mxu0 0.0
  %407 = vmatpush1.msra.mxu0 0.0
  %408 = vmatprep.subr.mxu0 0.0
  %409 = vmatpush1.msra.mxu0 0.0
  %410 = vmatprep.subr.mxu0 0.0
  %411 = vmatpush1.msra.mxu0 0.0
  %412 = vmatprep.subr.mxu0 0.0
  %413 = vmatpush1.msra.mxu0 0.0
  %414 = vmatprep.subr.mxu0 0.0
  %415 = vmatpush1.msra.mxu0 0.0
  %416 = vmatprep.subr.mxu0 0.0
  %417 = vmatpush1.msra.mxu0 0.0
  %418 = vmatprep.subr.mxu0 0.0
  %419 = vmatpush1.msra.mxu0 0.0
  %420 = vmatprep.subr.mxu0 0.0
  %421 = vmatpush1.msra.mxu0 0.0
  %422 = vmatprep.subr.mxu0 0.0
  %423 = vmatpush1.msra.mxu0 0.0
  %424 = vmatprep.subr.mxu0 0.0
  %425 = vmatpush1.msra.mxu0 0.0
  %426 = vmatprep.subr.mxu0 0.0
  %427 = vmatpush1.msra.mxu0 0.0
  %428 = vmatprep.subr.mxu0 0.0
  %429 = vmatpush1.msra.mxu0 0.0
  %430 = vmatprep.subr.mxu0 0.0
  %431 = vmatpush1.msra.mxu0 0.0
  %432 = vmatprep.subr.mxu0 0.0
  %433 = vmatpush1.msra.mxu0 0.0
  %434 = vmatprep.subr.mxu0 0.0
  %435 = vmatpush1.msra.mxu0 0.0
  %436 = vmatprep.subr.mxu0 0.0
  %437 = vmatpush1.msra.mxu0 0.0
  %438 = vmatprep.subr.mxu0 0.0
  %439 = vmatpush1.msra.mxu0 0.0
  %440 = vmatprep.subr.mxu0 0.0
  %441 = vmatpush1.msra.mxu0 0.0
  %442 = vmatprep.mubr.f32.mxu0 0.0
  %443 = vmatmul.mubr.f32.gmra.mrb[0].mxu0 %v373
  %v444 = vpop.f32.mrb[0].mxu0
  %v445 = vadd.f32 %v364, %v444
  %v446 = vpop.f32.mrb[0].mxu0
  %447 = vmatprep.mubr.f32.mxu0 0.0
  %448 = vmatmul.mubr.f32.gmra.mrb[0].mxu0 %v376
  %v449 = vpop.f32.mrb[0].mxu0
  %v450 = vadd.f32 %v369, %v449
  %v451 = vpop.f32.mrb[0].mxu0
  %452 = vdwg.mxu0
  %453 = vst [vmem:[%s7] sm:$0xff] %v445
  %454 = vst [vmem:[%s7 + $0x8] sm:$0xff] %v450
  // Predicated region
  $region30: #{nest_mlp.1} parent=0 // pred_check
    _
  $region31: #{nest_mlp.1} parent=0 // pred_check_branch
    %456 = sbr.rel (0) target = $region33
  $region32: #{nest_mlp.1} parent=0 // pred_region
    _
  $region33: #{nest_mlp.1} parent=0 // pred_fallthru
    _
  // Predicated region
  $region34: #{nest_mlp.1} parent=0 // pred_check
    _
  $region35: #{nest_mlp.1} parent=0 // pred_check_branch
    %458 = sbr.rel (0) target = $region37
  $region36: #{nest_mlp.1} parent=0 // pred_region
    _
  $region37: #{nest_mlp.1} parent=0 // pred_fallthru
    _

</llo_original>
